<compile_context>
chip_gen: v7x
topology: tpu7x:2x2x1
jax: 0.10.0
libtpu: 0.0.40
codegen_flags: <defaults>
</compile_context>

<pallas_src>
import functools

import jax
import jax.numpy as jnp
from jax import lax
from jax.experimental import pallas as pl
from jax.experimental.pallas import tpu as pltpu


# ---------------------------------------------------------------------------
# Kernels
# ---------------------------------------------------------------------------

def _onehot_gather_kernel(ids_ref, emb_ref, out_ref):
    """Small-vocab path: gather via a one-hot matmul on the MXU.

    ids_ref : VMEM (T, 1) int32 block of token ids for this grid step
    emb_ref : VMEM (V, D) embedding table (constant index_map -> resident)
    out_ref : VMEM (T, D) output block
    """
    t_tokens = out_ref.shape[0]
    vocab = emb_ref.shape[0]
    ids = ids_ref[...]                                           # (T, 1) int32
    iota = lax.broadcasted_iota(jnp.int32, (t_tokens, vocab), 1)  # (T, V)
    onehot = (iota == ids).astype(emb_ref.dtype)                  # dense (T, V)
    out_ref[...] = jnp.dot(
        onehot, emb_ref[...], preferred_element_type=jnp.float32
    ).astype(out_ref.dtype)


def _gather_hbm_kernel(ids_ref, emb_hbm, out_ref, sem, *, tokens_per_block, window):
    """Large-vocab fallback: windowed row DMAs HBM -> pipelined output block.

    ids_ref : SMEM (N_pad,) int32 token ids (scalar prefetch)
    emb_hbm : HBM (V, D) embedding table (memory_space=pl.ANY)
    out_ref : VMEM (T, D) output block (written only by DMAs)
    sem     : (W,) DMA semaphores, one per in-flight slot
    """
    T = tokens_per_block
    W = window
    base = pl.program_id(0) * T

    def issue(j, slot):
        tok = ids_ref[base + j]
        pltpu.make_async_copy(emb_hbm.at[tok], out_ref.at[j], sem.at[slot]).start()

    # Prologue: fill the DMA window (static, W <= 32 copies).
    for j in range(W):
        issue(j, j)

    # Steady state: wait for copy j, then reuse its slot for copy j + W.
    def body(j, carry):
        slot = j % W
        # Dummy src (.at[0]); the wait amount only depends on the (D,) row size.
        pltpu.make_async_copy(emb_hbm.at[0], out_ref.at[j], sem.at[slot]).wait()

        @pl.when(j + W < T)
        def _():
            issue(j + W, slot)

        return carry

    lax.fori_loop(0, T, body, 0, unroll=4)


# ---------------------------------------------------------------------------
# Wrapper
# ---------------------------------------------------------------------------

def _round_up(x, m):
    return ((x + m - 1) // m) * m


def _sublane_multiple(dtype):
    # 8 for f32, 16 for bf16, 32 for int8/fp8: keeps (T, D) blocks sublane-dense.
    return max(8, 32 // jnp.dtype(dtype).itemsize)


def _vmem_capacity_bytes():
    try:
        return int(pltpu.get_tpu_info().vmem_capacity_bytes)
    except Exception:
        return 64 * 1024 * 1024  # conservative: v7x per-TensorCore VMEM


def uniform_embedding_lookup(token_ids, embeddings, *,
                             tokens_per_block=None,
                             onehot_max_vocab=2048,
                             dma_window=16,
                             force_hbm=False):
    """forward(token_ids) == embeddings[token_ids], via Pallas gather kernels."""
    orig_shape = tuple(token_ids.shape)
    V, D = embeddings.shape
    dtype = embeddings.dtype
    itemsize = jnp.dtype(dtype).itemsize
    assert D % 128 == 0, "embedding_dim must be a multiple of 128 (lane-dense blocks)"

    # Clamp ids (bounds safety for padded/garbage ids; see module docstring) and flatten.
    ids = jnp.clip(jnp.asarray(token_ids).reshape(-1).astype(jnp.int32), 0, V - 1)
    n_tokens = int(ids.shape[0])

    sub = _sublane_multiple(dtype)
    capacity = _vmem_capacity_bytes()

    def _pick_block(requested):
        return max(sub, _round_up(min(requested, n_tokens), sub))

    # --- Fast-path feasibility: one-hot MXU gather against a VMEM-resident table.
    T_onehot = _pick_block(tokens_per_block or 256)
    onehot_vmem = (2 * V * D * itemsize            # resident table (2 pipeline buffers)
                   + 2 * T_onehot * D * itemsize   # output block (2 buffers)
                   + 2 * T_onehot * 4              # id block (2 buffers)
                   + T_onehot * V * 4              # one-hot temporary
                   + T_onehot * D * 4              # f32 matmul accumulator
                   + (2 << 20))                    # headroom
    use_onehot = ((not force_hbm)
                  and V <= onehot_max_vocab
                  and onehot_vmem <= int(0.8 * capacity))
    # NOTE: pipeline_mode=pl.Buffered(1) on the table BlockSpec would halve its
    # footprint; since this path is restricted to small vocabularies the default
    # double-buffering is already far under budget, so we keep the portable form.

    if use_onehot:
        T = T_onehot
        n_pad = _round_up(n_tokens, T)
        ids_p = jnp.pad(ids, (0, n_pad - n_tokens)) if n_pad != n_tokens else ids
        ids_col = ids_p.reshape(n_pad, 1)
        grid = (n_pad // T,)

        cost = pl.CostEstimate(
            flops=2 * n_pad * V * D,
            transcendentals=0,
            bytes_accessed=int(V * D * itemsize + n_pad * D * itemsize + 4 * n_pad),
        )
        out = pl.pallas_call(
            _onehot_gather_kernel,
            out_shape=jax.ShapeDtypeStruct((n_pad, D), dtype),
            grid_spec=pltpu.PrefetchScalarGridSpec(
                num_scalar_prefetch=0,
                grid=grid,
                in_specs=[
                    pl.BlockSpec((T, 1), lambda t: (t, 0)),   # ids column block
                    pl.BlockSpec((V, D), lambda t: (0, 0)),   # resident table
                ],
                out_specs=pl.BlockSpec((T, D), lambda t: (t, 0)),
            ),
            compiler_params=pltpu.CompilerParams(
                # TODO(synk): on v7x, pltpu.CORE_PARALLEL / an explicit core_map
                # may be needed to actually shard token blocks across the two
                # TensorCores; "parallel" is the portable choice here.
                dimension_semantics=("parallel",),
                vmem_limit_bytes=int(min(0.9 * capacity, max(onehot_vmem, 32 << 20))),
            ),
            cost_estimate=cost,
        )(ids_col, embeddings)
    else:
        # HBM-path block can be bigger: VMEM cost is only the 2x (T, D) output block.
        T = _pick_block(tokens_per_block or 512)
        W = max(1, min(dma_window, T))
        n_pad = _round_up(n_tokens, T)
        ids_p = jnp.pad(ids, (0, n_pad - n_tokens)) if n_pad != n_tokens else ids
        grid = (n_pad // T,)

        cost = pl.CostEstimate(
            flops=0,
            transcendentals=0,
            bytes_accessed=int(2 * n_pad * D * itemsize + 4 * n_pad),
        )
        out = pl.pallas_call(
            functools.partial(_gather_hbm_kernel, tokens_per_block=T, window=W),
            out_shape=jax.ShapeDtypeStruct((n_pad, D), dtype),
            grid_spec=pltpu.PrefetchScalarGridSpec(
                num_scalar_prefetch=1,                            # ids -> SMEM
                grid=grid,
                in_specs=[pl.BlockSpec(memory_space=pl.ANY)],     # raw HBM table
                out_specs=pl.BlockSpec((T, D), lambda t, ids_ref: (t, 0)),
                scratch_shapes=[pltpu.SemaphoreType.DMA((W,))],   # per-slot sems
            ),
            compiler_params=pltpu.CompilerParams(
                dimension_semantics=("parallel",),
            ),
            cost_estimate=cost,
        )(ids_p, embeddings)

    out = out[:n_tokens]
    return out.reshape(*orig_shape, D)


def init_uniform_embedding_space(key, vocab_size, embedding_dim, dtype=jnp.float32):
    """Parameter init matching the PyTorch __init__: randn(V, D) rows, L2-normalized."""
    emb = jax.random.normal(key, (vocab_size, embedding_dim), dtype=jnp.float32)
    emb = emb / jnp.linalg.norm(emb, axis=1, keepdims=True)
    return emb.astype(dtype)


# TODO(synk): clean_descriptions / dataset construction is host-side text
# preprocessing with no kernel equivalent; only the embedding forward is lowered.


if __name__ == "__main__":
    # Small shapes consistent with the module (embedding_dim matches the spec).
    vocab_size = 32        # stands in for len(dataset)
    embedding_dim = 768    # module's embedding_dim (multiple of 128)
    batch, seq = 2, 8      # token_ids shape (2, 8) -> output (2, 8, 768)

    key = jax.random.PRNGKey(0)
    k_emb, k_ids, k_ids2 = jax.random.split(key, 3)

    embeddings = init_uniform_embedding_space(k_emb, vocab_size, embedding_dim)
    token_ids = jax.random.randint(k_ids, (batch, seq), 0, vocab_size, dtype=jnp.int32)

    ref = embeddings[token_ids]

    # Fast path: one-hot MXU gather against the VMEM-resident table.
    out_fast = jax.block_until_ready(uniform_embedding_lookup(token_ids, embeddings))
    assert out_fast.shape == (batch, seq, embedding_dim)
    assert jnp.allclose(out_fast, ref), "one-hot MXU gather mismatch vs reference"

    # Fallback path: windowed HBM row DMAs into the pipelined output block.
    out_hbm = jax.block_until_ready(
        uniform_embedding_lookup(token_ids, embeddings, force_hbm=True))
    assert out_hbm.shape == (batch, seq, embedding_dim)
    assert jnp.allclose(out_hbm, ref), "HBM DMA gather mismatch vs reference"

    # Larger token count exercises multi-block grids and the steady-state DMA
    # window (256 tokens, T=128, W=16).
    token_ids2 = jax.random.randint(k_ids2, (4, 64), 0, vocab_size, dtype=jnp.int32)
    ref2 = embeddings[token_ids2]
    out2_fast = jax.block_until_ready(
        uniform_embedding_lookup(token_ids2, embeddings, tokens_per_block=128))
    out2_hbm = jax.block_until_ready(
        uniform_embedding_lookup(token_ids2, embeddings, tokens_per_block=128,
                                 force_hbm=True))
    assert jnp.allclose(out2_fast, ref2), "multi-block one-hot gather mismatch"
    assert jnp.allclose(out2_hbm, ref2), "multi-block HBM gather mismatch"

    print("KERNEL_OK")
</pallas_src>

<mosaic_0001>
module attributes {stable_mosaic.version = 11 : i64} {
  func.func @_onehot_gather_kernel(%arg0: i32, %arg1: memref<16x1xi32, #tpu.memory_space<vmem>>, %arg2: memref<32x768xf32, #tpu.memory_space<vmem>>, %arg3: memref<16x768xf32, #tpu.memory_space<vmem>>) attributes {dimension_semantics = [#tpu.dimension_semantics<parallel>], iteration_bounds = array<i64: 1>, scalar_prefetch = 0 : i64, scratch_operands = 0 : i64, tpu.core_type = #tpu.core_type<tc>, window_params = [{transform_indices = @transform_0, window_bounds = array<i64: 16, 1>}, {pipeline_mode = #tpu.pipeline_mode<synchronous>, transform_indices = @transform_1, window_bounds = array<i64: 32, 768>}, {transform_indices = @transform_2, window_bounds = array<i64: 16, 768>}]} {
    %c0 = arith.constant 0 : index
    %c0_0 = arith.constant 0 : index
    %0 = vector.load %arg1[%c0, %c0_0] : memref<16x1xi32, #tpu.memory_space<vmem>>, vector<16x1xi32>
    %1 = tpu.iota {dimensions = array<i32: 1>} : vector<16x32xi32>
    %2 = vector.broadcast %0 : vector<16x1xi32> to vector<16x32xi32>
    %3 = arith.cmpi eq, %1, %2 : vector<16x32xi32>
    %4 = arith.extui %3 : vector<16x32xi1> to vector<16x32xi32>
    %5 = arith.sitofp %4 : vector<16x32xi32> to vector<16x32xf32>
    %c0_1 = arith.constant 0 : index
    %c0_2 = arith.constant 0 : index
    %6 = vector.load %arg2[%c0_1, %c0_2] : memref<32x768xf32, #tpu.memory_space<vmem>>, vector<32x768xf32>
    %cst = arith.constant dense<0.000000e+00> : vector<16x768xf32>
    %7 = tpu.matmul %5, %6, %cst {dimension_numbers = #tpu.dot_dimension_numbers<[1], [0], [0], [1], [0, 0, 1, 1], [], []>} : vector<16x32xf32>, vector<32x768xf32>, vector<16x768xf32> -> vector<16x768xf32>
    %c0_3 = arith.constant 0 : index
    %c0_4 = arith.constant 0 : index
    %8 = vector.load %arg3[%c0_3, %c0_4] : memref<16x768xf32, #tpu.memory_space<vmem>>, vector<16x768xf32>
    tpu.vector_store %arg3[%c0_3, %c0_4], %7 {strides = array<i32>} : memref<16x768xf32, #tpu.memory_space<vmem>>, vector<16x768xf32>,
    return
  }
  func.func @transform_0(%arg0: i32) -> (i32, i32) {
    %c0_i32 = arith.constant 0 : i32
    %c0_i32_0 = arith.constant 0 : i32
    return %arg0, %c0_i32 : i32, i32
  }
  func.func @transform_1(%arg0: i32) -> (i32, i32) {
    %c0_i32 = arith.constant 0 : i32
    %c0_i32_0 = arith.constant 0 : i32
    %c0_i32_1 = arith.constant 0 : i32
    return %c0_i32, %c0_i32_0 : i32, i32
  }
  func.func @transform_2(%arg0: i32) -> (i32, i32) {
    %c0_i32 = arith.constant 0 : i32
    %c0_i32_0 = arith.constant 0 : i32
    return %arg0, %c0_i32 : i32, i32
  }
}

</mosaic_0001>

<llo_original>
// kernel: tpu_custom_call.1
$region0: #{tpu_custom_call.1}
  #allocation0 [shape = 'u32[]', space=smem, size = 0x4, offset = 0x4, fixed_abs, tag = 'smem constant byte address 0x4 - core index']
  #allocation1 [shape = 'u32[144,128]{1,0:T(1,128)}', space=vmem, size = 0x12000, scoped, tag = 'internal scratch']
  %s0 = inlined_call_operand.vmem [shape: s32[16,1], index: 0, kind: input, shape index: {}]
  %s1 = inlined_call_operand.hbm [shape: f32[32,768], index: 1, kind: input, shape index: {}]
  %s2 = inlined_call_operand.hbm [shape: f32[16,768], index: 2, kind: output, shape index: {}]
  %s3 = sld [smem:[#allocation0]]
  $region22: #{tpu_custom_call.1} parent=0
    _
  %s5 = ssub.s32 1, %s3
  %s6 = scalar_select 0, %s5, %s3
  $region1: #{tpu_custom_call.1} parent=0
    #allocation2 [shape = 'u8[98304]{0}', space=vmem, size = 0x18000, scoped, tag = 'input window, operand 1, single buffered']
    #allocation3 [shape = 's32[1]{0}', space=sflag, size = 0x4, scoped, tag = 'scoped memory for tpu_custom_call.1']
    #allocation4 [shape = 's32[1]{0}', space=sflag, size = 0x4, scoped, tag = 'scoped memory for tpu_custom_call.1']
    #allocation5 [shape = 'u8[49152]{0}', space=vmem, size = 0xc000, scoped, tag = 'output window, operand 0, single buffered']
    %7 = vsyncpa [#allocation3], 0
    %8 = vsyncpa [#allocation4], 0
    // Predicated region
    $region2: #{tpu_custom_call.1} parent=1 // pred_check
      _
    $region3: #{tpu_custom_call.1} parent=1 // pred_check_branch
      %10 = sbr.rel (0) target = $region5
    $region4: #{tpu_custom_call.1} parent=1 // pred_region
      _
    $region5: #{tpu_custom_call.1} parent=1 // pred_fallthru
      _
    // Predicated region
    $region6: #{tpu_custom_call.1} parent=1 // pred_check
      _
    $region7: #{tpu_custom_call.1} parent=1 // pred_check_branch
      %12 = sbr.rel (0) target = $region9
    $region8: #{tpu_custom_call.1} parent=1 // pred_region
      %s14 = ssub.s32 3072, 3072
      %15 = vsyncadd [#allocation3], %s14
      %s16 = sshll.u32 [#allocation2], 4
      %s17 = int_to_ptr.vmem [resolvable:$true] %s16
      %22 = dma.hbm_to_vmem [thread:$0]  %s1, 3072, %s17, [#allocation3], 768, 768, 48
    $region9: #{tpu_custom_call.1} parent=1 // pred_fallthru
      _
    // Predicated region
    $region10: #{tpu_custom_call.1} parent=1 // pred_check
      _
    $region11: #{tpu_custom_call.1} parent=1 // pred_check_branch
      %24 = sbr.rel (0) target = $region13
    $region12: #{tpu_custom_call.1} parent=1 // pred_region
      %25 = dma.done [#allocation3], 3072
    $region13: #{tpu_custom_call.1} parent=1 // pred_fallthru
      _
    %v26 = vld [vmem:[%s0] sm:$0xff]
    %v27 = vld [vmem:[%s0 + $0x8] sm:$0xff]
    %v28 = vlaneseq
    %v29 = vand.u32 %v28, 127
    %30 = vset.pattern.permute.xlu0 0
    %31 = vperm.xlu0 %30, %v26
    %v32 = vpop.permute.xlu0 %31
    %33 = vset.pattern.permute.xlu0 0
    %34 = vperm.xlu0 %33, %v27
    %v35 = vpop.permute.xlu0 %34
    %vm36 = vcmp.eq.s32.totalorder %v29, %v32
    %vm37 = vcmp.eq.s32.totalorder %v29, %v35
    %v38 = vsel %vm36, 1, 0
    %v39 = vsel %vm37, 1, 0
    %v40 = vcvt.s32.f32 %v38
    %v41 = vcvt.s32.f32 %v39
    %v42 = vld [vmem:[#allocation2] sm:$0xff]
    %v43 = vld [vmem:[#allocation2 + $0x8] sm:$0xff]
    %v44 = vld [vmem:[#allocation2 + $0x10] sm:$0xff]
    %v45 = vld [vmem:[#allocation2 + $0x18] sm:$0xff]
    %v46 = vld [vmem:[#allocation2 + $0x20] sm:$0xff]
    %v47 = vld [vmem:[#allocation2 + $0x28] sm:$0xff]
    %v48 = vld [vmem:[#allocation2 + $0x30] sm:$0xff]
    %v49 = vld [vmem:[#allocation2 + $0x38] sm:$0xff]
    %v50 = vld [vmem:[#allocation2 + $0x40] sm:$0xff]
    %v51 = vld [vmem:[#allocation2 + $0x48] sm:$0xff]
    %v52 = vld [vmem:[#allocation2 + $0x50] sm:$0xff]
    %v53 = vld [vmem:[#allocation2 + $0x58] sm:$0xff]
    %v54 = vld [vmem:[#allocation2 + $0x60] sm:$0xff]
    %v55 = vld [vmem:[#allocation2 + $0x68] sm:$0xff]
    %v56 = vld [vmem:[#allocation2 + $0x70] sm:$0xff]
    %v57 = vld [vmem:[#allocation2 + $0x78] sm:$0xff]
    %v58 = vld [vmem:[#allocation2 + $0x80] sm:$0xff]
    %v59 = vld [vmem:[#allocation2 + $0x88] sm:$0xff]
    %v60 = vld [vmem:[#allocation2 + $0x90] sm:$0xff]
    %v61 = vld [vmem:[#allocation2 + $0x98] sm:$0xff]
    %v62 = vld [vmem:[#allocation2 + $0xa0] sm:$0xff]
    %v63 = vld [vmem:[#allocation2 + $0xa8] sm:$0xff]
    %v64 = vld [vmem:[#allocation2 + $0xb0] sm:$0xff]
    %v65 = vld [vmem:[#allocation2 + $0xb8] sm:$0xff]
    %vm66 = vcmask 261120
    %v68 = vsel %vm66, %v40, 0
    %v71 = vsel %vm66, %v41, 0
    %73 = vmatprep.subr.mxu0 %v43
    %74 = vmatpush1.msra.mxu0 %v42
    %75 = vmatprep.subr.mxu0 %v49
    %76 = vmatpush1.msra.mxu0 %v48
    %77 = vmatprep.subr.mxu0 %v55
    %78 = vmatpush1.msra.mxu0 %v54
    %79 = vmatprep.subr.mxu0 %v61
    %80 = vmatpush1.msra.mxu0 %v60
    %81 = vmatprep.subr.mxu0 0.0
    %82 = vmatpush1.msra.mxu0 0.0
    %83 = vmatprep.subr.mxu0 0.0
    %84 = vmatpush1.msra.mxu0 0.0
    %85 = vmatprep.subr.mxu0 0.0
    %86 = vmatpush1.msra.mxu0 0.0
    %87 = vmatprep.subr.mxu0 0.0
    %88 = vmatpush1.msra.mxu0 0.0
    %89 = vmatprep.subr.mxu0 0.0
    %90 = vmatpush1.msra.mxu0 0.0
    %91 = vmatprep.subr.mxu0 0.0
    %92 = vmatpush1.msra.mxu0 0.0
    %93 = vmatprep.subr.mxu0 0.0
    %94 = vmatpush1.msra.mxu0 0.0
    %95 = vmatprep.subr.mxu0 0.0
    %96 = vmatpush1.msra.mxu0 0.0
    %97 = vmatprep.subr.mxu0 0.0
    %98 = vmatpush1.msra.mxu0 0.0
    %99 = vmatprep.subr.mxu0 0.0
    %100 = vmatpush1.msra.mxu0 0.0
    %101 = vmatprep.subr.mxu0 0.0
    %102 = vmatpush1.msra.mxu0 0.0
    %103 = vmatprep.subr.mxu0 0.0
    %104 = vmatpush1.msra.mxu0 0.0
    %105 = vmatprep.subr.mxu0 0.0
    %106 = vmatpush1.msra.mxu0 0.0
    %107 = vmatprep.subr.mxu0 0.0
    %108 = vmatpush1.msra.mxu0 0.0
    %109 = vmatprep.subr.mxu0 0.0
    %110 = vmatpush1.msra.mxu0 0.0
    %111 = vmatprep.subr.mxu0 0.0
    %112 = vmatpush1.msra.mxu0 0.0
    %113 = vmatprep.subr.mxu0 0.0
    %114 = vmatpush1.msra.mxu0 0.0
    %115 = vmatprep.subr.mxu0 0.0
    %116 = vmatpush1.msra.mxu0 0.0
    %117 = vmatprep.subr.mxu0 0.0
    %118 = vmatpush1.msra.mxu0 0.0
    %119 = vmatprep.subr.mxu0 0.0
    %120 = vmatpush1.msra.mxu0 0.0
    %121 = vmatprep.subr.mxu0 0.0
    %122 = vmatpush1.msra.mxu0 0.0
    %123 = vmatprep.subr.mxu0 0.0
    %124 = vmatpush1.msra.mxu0 0.0
    %125 = vmatprep.subr.mxu0 0.0
    %126 = vmatpush1.msra.mxu0 0.0
    %127 = vmatprep.subr.mxu0 0.0
    %128 = vmatpush1.msra.mxu0 0.0
    %129 = vmatprep.subr.mxu0 0.0
    %130 = vmatpush1.msra.mxu0 0.0
    %131 = vmatprep.subr.mxu0 0.0
    %132 = vmatpush1.msra.mxu0 0.0
    %133 = vmatprep.subr.mxu0 0.0
    %134 = vmatpush1.msra.mxu0 0.0
    %135 = vmatprep.subr.mxu0 0.0
    %136 = vmatpush1.msra.mxu0 0.0
    %137 = vmatprep.mubr.f32.mxu0 0.0
    %138 = vmatmul.mubr.f32.gmra.mrb[0].mxu0 %v68
    %v139 = vpop.f32.mrb[0].mxu0
    %v140 = vadd.f32 0.0, %v139
    %v141 = vpop.f32.mrb[0].mxu0
    %v142 = vadd.f32 0.0, %v141
    %143 = vmatprep.mubr.f32.mxu0 0.0
    %144 = vmatmul.mubr.f32.gmra.mrb[0].mxu0 %v71
    %v145 = vpop.f32.mrb[0].mxu0
    %v146 = vadd.f32 0.0, %v145
    %v147 = vpop.f32.mrb[0].mxu0
    %v148 = vadd.f32 0.0, %v147
    %149 = vdwg.mxu0
    %150 = vmatprep.subr.mxu0 %v45
    %151 = vmatpush1.msra.mxu0 %v44
    %152 = vmatprep.subr.mxu0 %v51
    %153 = vmatpush1.msra.mxu0 %v50
    %154 = vmatprep.subr.mxu0 %v57
    %155 = vmatpush1.msra.mxu0 %v56
    %156 = vmatprep.subr.mxu0 %v63
    %157 = vmatpush1.msra.mxu0 %v62
    %158 = vmatprep.subr.mxu0 0.0
    %159 = vmatpush1.msra.mxu0 0.0
    %160 = vmatprep.subr.mxu0 0.0
    %161 = vmatpush1.msra.mxu0 0.0
    %162 = vmatprep.subr.mxu0 0.0
    %163 = vmatpush1.msra.mxu0 0.0
    %164 = vmatprep.subr.mxu0 0.0
    %165 = vmatpush1.msra.mxu0 0.0
    %166 = vmatprep.subr.mxu0 0.0
    %167 = vmatpush1.msra.mxu0 0.0
    %168 = vmatprep.subr.mxu0 0.0
    %169 = vmatpush1.msra.mxu0 0.0
    %170 = vmatprep.subr.mxu0 0.0
    %171 = vmatpush1.msra.mxu0 0.0
    %172 = vmatprep.subr.mxu0 0.0
    %173 = vmatpush1.msra.mxu0 0.0
    %174 = vmatprep.subr.mxu0 0.0
    %175 = vmatpush1.msra.mxu0 0.0
    %176 = vmatprep.subr.mxu0 0.0
    %177 = vmatpush1.msra.mxu0 0.0
    %178 = vmatprep.subr.mxu0 0.0
    %179 = vmatpush1.msra.mxu0 0.0
    %180 = vmatprep.subr.mxu0 0.0
    %181 = vmatpush1.msra.mxu0 0.0
    %182 = vmatprep.subr.mxu0 0.0
    %183 = vmatpush1.msra.mxu0 0.0
    %184 = vmatprep.subr.mxu0 0.0
    %185 = vmatpush1.msra.mxu0 0.0
    %186 = vmatprep.subr.mxu0 0.0
    %187 = vmatpush1.msra.mxu0 0.0
    %188 = vmatprep.subr.mxu0 0.0
    %189 = vmatpush1.msra.mxu0 0.0
    %190 = vmatprep.subr.mxu0 0.0
    %191 = vmatpush1.msra.mxu0 0.0
    %192 = vmatprep.subr.mxu0 0.0
    %193 = vmatpush1.msra.mxu0 0.0
    %194 = vmatprep.subr.mxu0 0.0
    %195 = vmatpush1.msra.mxu0 0.0
    %196 = vmatprep.subr.mxu0 0.0
    %197 = vmatpush1.msra.mxu0 0.0
    %198 = vmatprep.subr.mxu0 0.0
    %199 = vmatpush1.msra.mxu0 0.0
    %200 = vmatprep.subr.mxu0 0.0
    %201 = vmatpush1.msra.mxu0 0.0
    %202 = vmatprep.subr.mxu0 0.0
    %203 = vmatpush1.msra.mxu0 0.0
    %204 = vmatprep.subr.mxu0 0.0
    %205 = vmatpush1.msra.mxu0 0.0
    %206 = vmatprep.subr.mxu0 0.0
    %207 = vmatpush1.msra.mxu0 0.0
    %208 = vmatprep.subr.mxu0 0.0
    %209 = vmatpush1.msra.mxu0 0.0
    %210 = vmatprep.subr.mxu0 0.0
    %211 = vmatpush1.msra.mxu0 0.0
    %212 = vmatprep.subr.mxu0 0.0
    %213 = vmatpush1.msra.mxu0 0.0
    %214 = vmatprep.mubr.f32.mxu0 0.0
    %215 = vmatmul.mubr.f32.gmra.mrb[0].mxu0 %v68
    %v216 = vpop.f32.mrb[0].mxu0
    %v217 = vadd.f32 0.0, %v216
    %v218 = vpop.f32.mrb[0].mxu0
    %v219 = vadd.f32 0.0, %v218
    %220 = vmatprep.mubr.f32.mxu0 0.0
    %221 = vmatmul.mubr.f32.gmra.mrb[0].mxu0 %v71
    %v222 = vpop.f32.mrb[0].mxu0
    %v223 = vadd.f32 0.0, %v222
    %v224 = vpop.f32.mrb[0].mxu0
    %v225 = vadd.f32 0.0, %v224
    %226 = vdwg.mxu0
    %227 = vmatprep.subr.mxu0 %v47
    %228 = vmatpush1.msra.mxu0 %v46
    %229 = vmatprep.subr.mxu0 %v53
    %230 = vmatpush1.msra.mxu0 %v52
    %231 = vmatprep.subr.mxu0 %v59
    %232 = vmatpush1.msra.mxu0 %v58
    %233 = vmatprep.subr.mxu0 %v65
    %234 = vmatpush1.msra.mxu0 %v64
    %235 = vmatprep.subr.mxu0 0.0
    %236 = vmatpush1.msra.mxu0 0.0
    %237 = vmatprep.subr.mxu0 0.0
    %238 = vmatpush1.msra.mxu0 0.0
    %239 = vmatprep.subr.mxu0 0.0
    %240 = vmatpush1.msra.mxu0 0.0
    %241 = vmatprep.subr.mxu0 0.0
    %242 = vmatpush1.msra.mxu0 0.0
    %243 = vmatprep.subr.mxu0 0.0
    %244 = vmatpush1.msra.mxu0 0.0
    %245 = vmatprep.subr.mxu0 0.0
    %246 = vmatpush1.msra.mxu0 0.0
    %247 = vmatprep.subr.mxu0 0.0
    %248 = vmatpush1.msra.mxu0 0.0
    %249 = vmatprep.subr.mxu0 0.0
    %250 = vmatpush1.msra.mxu0 0.0
    %251 = vmatprep.subr.mxu0 0.0
    %252 = vmatpush1.msra.mxu0 0.0
    %253 = vmatprep.subr.mxu0 0.0
    %254 = vmatpush1.msra.mxu0 0.0
    %255 = vmatprep.subr.mxu0 0.0
    %256 = vmatpush1.msra.mxu0 0.0
    %257 = vmatprep.subr.mxu0 0.0
    %258 = vmatpush1.msra.mxu0 0.0
    %259 = vmatprep.subr.mxu0 0.0
    %260 = vmatpush1.msra.mxu0 0.0
    %261 = vmatprep.subr.mxu0 0.0
    %262 = vmatpush1.msra.mxu0 0.0
    %263 = vmatprep.subr.mxu0 0.0
    %264 = vmatpush1.msra.mxu0 0.0
    %265 = vmatprep.subr.mxu0 0.0
    %266 = vmatpush1.msra.mxu0 0.0
    %267 = vmatprep.subr.mxu0 0.0
    %268 = vmatpush1.msra.mxu0 0.0
    %269 = vmatprep.subr.mxu0 0.0
    %270 = vmatpush1.msra.mxu0 0.0
    %271 = vmatprep.subr.mxu0 0.0
    %272 = vmatpush1.msra.mxu0 0.0
    %273 = vmatprep.subr.mxu0 0.0
    %274 = vmatpush1.msra.mxu0 0.0
    %275 = vmatprep.subr.mxu0 0.0
    %276 = vmatpush1.msra.mxu0 0.0
    %277 = vmatprep.subr.mxu0 0.0
    %278 = vmatpush1.msra.mxu0 0.0
    %279 = vmatprep.subr.mxu0 0.0
    %280 = vmatpush1.msra.mxu0 0.0
    %281 = vmatprep.subr.mxu0 0.0
    %282 = vmatpush1.msra.mxu0 0.0
    %283 = vmatprep.subr.mxu0 0.0
    %284 = vmatpush1.msra.mxu0 0.0
    %285 = vmatprep.subr.mxu0 0.0
    %286 = vmatpush1.msra.mxu0 0.0
    %287 = vmatprep.subr.mxu0 0.0
    %288 = vmatpush1.msra.mxu0 0.0
    %289 = vmatprep.subr.mxu0 0.0
    %290 = vmatpush1.msra.mxu0 0.0
    %291 = vmatprep.mubr.f32.mxu0 0.0
    %292 = vmatmul.mubr.f32.gmra.mrb[0].mxu0 %v68
    %v293 = vpop.f32.mrb[0].mxu0
    %v294 = vadd.f32 0.0, %v293
    %v295 = vpop.f32.mrb[0].mxu0
    %v296 = vadd.f32 0.0, %v295
    %297 = vmatprep.mubr.f32.mxu0 0.0
    %298 = vmatmul.mubr.f32.gmra.mrb[0].mxu0 %v71
    %v299 = vpop.f32.mrb[0].mxu0
    %v300 = vadd.f32 0.0, %v299
    %v301 = vpop.f32.mrb[0].mxu0
    %v302 = vadd.f32 0.0, %v301
    %303 = vdwg.mxu0
    %304 = vst [vmem:[#allocation5] sm:$0xff] %v140
    %305 = vst [vmem:[#allocation5 + $0x8] sm:$0xff] %v142
    %306 = vst [vmem:[#allocation5 + $0x10] sm:$0xff] %v217
    %307 = vst [vmem:[#allocation5 + $0x18] sm:$0xff] %v219
    %308 = vst [vmem:[#allocation5 + $0x20] sm:$0xff] %v294
    %309 = vst [vmem:[#allocation5 + $0x28] sm:$0xff] %v296
    %310 = vst [vmem:[#allocation5 + $0x30] sm:$0xff] %v146
    %311 = vst [vmem:[#allocation5 + $0x38] sm:$0xff] %v148
    %312 = vst [vmem:[#allocation5 + $0x40] sm:$0xff] %v223
    %313 = vst [vmem:[#allocation5 + $0x48] sm:$0xff] %v225
    %314 = vst [vmem:[#allocation5 + $0x50] sm:$0xff] %v300
    %315 = vst [vmem:[#allocation5 + $0x58] sm:$0xff] %v302
    // Predicated region
    $region14: #{tpu_custom_call.1} parent=1 // pred_check
      _
    $region15: #{tpu_custom_call.1} parent=1 // pred_check_branch
      %317 = sbr.rel (0) target = $region17
    $region16: #{tpu_custom_call.1} parent=1 // pred_region
      %s319 = ssub.s32 1536, 1536
      %320 = vsyncadd [#allocation4], %s319
      %s321 = sshll.u32 [#allocation5], 4
      %s322 = int_to_ptr.vmem [resolvable:$true] %s321
      %327 = dma.vmem_to_hbm [thread:$0]  %s322, 1536, %s2, [#allocation4], 768, 768, 48
    $region17: #{tpu_custom_call.1} parent=1 // pred_fallthru
      _
    // Predicated region
    $region18: #{tpu_custom_call.1} parent=1 // pred_check
      _
    $region19: #{tpu_custom_call.1} parent=1 // pred_check_branch
      %329 = sbr.rel (0) target = $region21
    $region20: #{tpu_custom_call.1} parent=1 // pred_region
      %330 = dma.done [#allocation4], 1536
    $region21: #{tpu_custom_call.1} parent=1 // pred_fallthru
      _
    %331 = vsyncpa [#allocation3], 1
    %332 = vsyncpa [#allocation4], 1

</llo_original>
